<compile_context>
chip_gen: v7x
topology: tpu7x:2x2x1
jax: 0.10.0
libtpu: 0.0.40
codegen_flags: <defaults>
</compile_context>

<pallas_src>
import math

import jax
import jax.numpy as jnp
from jax.experimental import pallas as pl
from jax.experimental.pallas import tpu as pltpu


def _pad8(n):
    return ((int(n) + 7) // 8) * 8


def _pad128(n):
    return ((int(n) + 127) // 128) * 128


def _lly_fold(cy):
    """Static fold plan for the log-likelihood accumulator.

    Returns (use_pair, groups, rows): pairwise product before the log when the
    channel count is even, then fold groups of 8 sublanes into an (rows, TL)
    accumulator when possible.
    """
    use_pair = (cy % 2 == 0) and cy >= 2
    rows = cy // 2 if use_pair else cy
    if rows % 8 == 0 and rows > 8:
        return use_pair, rows // 8, 8
    return use_pair, 1, rows


def _pick_lane_tile(hw, cap, per_lane_bytes, vmem_tile_budget):
    """Pick the lane tile TL.

    If hw fits under the cap, use the full extent (always layout-legal, even
    for hw < 128 / non-multiples of 128).  Otherwise use a multiple-of-128 tile
    bounded both by `cap` and by a VMEM budget; the ragged last tile is handled
    by an in-kernel lane mask, so no divisor search is needed.
    """
    cap = max(128, (int(cap) // 128) * 128)
    if per_lane_bytes > 0:
        by_vmem = int(vmem_tile_budget) // int(per_lane_bytes)
        cap = min(cap, max(128, (by_vmem // 128) * 128))
    if hw <= cap:
        return int(hw)
    return int(cap)


def _nc_hw3(x):
    # NCHW -> (N, C, H*W): free contiguous reshape, native dtype preserved.
    n, c, h, w = x.shape
    return x.reshape(n, c, h * w)


def _make_kernel(*, cy, tl, tpp, hw, needs_mask, use_pair, lly_groups, lly_rows):
    def kernel(wT_ref, b_ref, y_ref, imgc_ref, xh_ref, imgt_ref,
               xhd_ref, imgd_ref, liky_ref, likz_ref, o_ref,
               sq_acc, lly_acc):
        p = pl.program_id(1)
        t = pl.program_id(2)
        t_last = pl.num_programs(2) - 1

        @pl.when(t == 0)
        def _init():
            sq_acc[...] = jnp.zeros_like(sq_acc)
            lly_acc[...] = jnp.zeros_like(lly_acc)

        if needs_mask:
            off = (p * tpp + t) * tl
            lane = jax.lax.broadcasted_iota(jnp.int32, (1, tl), 1)
            mask = (lane + off) < hw
        else:
            mask = None

        # fixed_decoder: 1x1 conv over channels == (C, Cy) @ (Cy, TL) MXU matmul.
        y = y_ref[0].astype(jnp.float32)                       # (Cy, TL)
        bias = b_ref[...][:, :1]                               # (C, 1), lane-bcast
        x_clear = jnp.dot(wT_ref[...], y,
                          preferred_element_type=jnp.float32) + bias

        d1 = xh_ref[0].astype(jnp.float32) - imgt_ref[0].astype(jnp.float32)
        d2 = x_clear - imgc_ref[0].astype(jnp.float32)
        d3 = xhd_ref[0].astype(jnp.float32) - imgd_ref[0].astype(jnp.float32)

        # Downstream only ever needs (3*l1 + l2 + l3): accumulate weighted SSE.
        wsq = 3.0 * (d1 * d1) + d2 * d2 + d3 * d3
        if mask is not None:
            wsq = jnp.where(mask, wsq, 0.0)
        sq_acc[...] += wsq

        liky = liky_ref[0].astype(jnp.float32)                 # (Cy, TL)
        if mask is not None:
            liky = jnp.where(mask, liky, 1.0)                  # log(1) == 0
        if use_pair:
            # log(a) + log(b) == log(a*b): halves EUP log pushes; safe in f32
            # for likelihoods >= ~1e-18 (compressai lower-bounds at ~1e-9).
            liky = liky[: cy // 2] * liky[cy // 2:]
        lg = jnp.log(liky)                                     # (rows, TL)
        folded = lg[:lly_rows]
        for g in range(1, lly_groups):
            folded = folded + lg[g * lly_rows:(g + 1) * lly_rows]
        lly_acc[...] += folded

        @pl.when(t == t_last)
        def _finalize():
            sse_w = jnp.sum(sq_acc[...])                       # 3*sse1 + sse2 + sse3
            ll_y = jnp.sum(lly_acc[...])
            ll_z = jnp.sum(jnp.log(likz_ref[0].astype(jnp.float32)))
            ll_z = jnp.where(p == 0, ll_z, 0.0)                # count z once per n
            lane_o = jax.lax.broadcasted_iota(jnp.int32, (1, 1, 128), 2)
            o_ref[...] = (jnp.where(lane_o == 0, sse_w, 0.0)
                          + jnp.where(lane_o == 1, ll_y, 0.0)
                          + jnp.where(lane_o == 2, ll_z, 0.0))
    return kernel


def multi_branch_rd_loss(output, img_target, img_clear, img_distortion,
                         dec_w, dec_b, lmbda=0.01, lane_tile_cap=16384,
                         vmem_tile_budget=24 << 20):
    """JAX/Pallas equivalent of MultiBranchRateDistortionLoss.forward
    (metric='mse', return_type='all').  `dec_w` (C_y, C_img) and `dec_b`
    (C_img,) are the fixed_decoder (1x1 conv) parameters."""
    N, C, H, W = img_target.shape
    HW = H * W
    num_pixels = N * H * W
    Cy = output['y_hat_clear'].shape[1]
    assert output['y_hat_clear'].shape == (N, Cy, H, W)
    assert output['likelihoods']['y'].shape == (N, Cy, H, W)

    use_pair, lly_groups, lly_rows = _lly_fold(Cy)

    # VMEM bytes per lane of tile: double-buffered input blocks + f32 scratch.
    img_isz = img_target.dtype.itemsize
    lat_isz = output['y_hat_clear'].dtype.itemsize
    lik_isz = output['likelihoods']['y'].dtype.itemsize
    per_lane_bytes = (2 * (5 * _pad8(C) * img_isz
                           + _pad8(Cy) * lat_isz
                           + _pad8(Cy) * lik_isz)
                      + 4 * (_pad8(C) + _pad8(lly_rows)))
    TL = _pick_lane_tile(HW, lane_tile_cap, per_lane_bytes, vmem_tile_budget)

    T_total = -(-HW // TL)                       # cdiv; ragged tail lane-masked
    NP = 2 if (N % 2 == 1 and T_total >= 2) else 1   # keep both v7x TCs busy
    TPP = -(-T_total // NP)
    needs_mask = (NP * TPP * TL != HW)
    T_LAST = T_total - 1

    # Free reshapes only (no transpose, no dtype change on the big tensors).
    imgc3 = _nc_hw3(img_clear)
    xh3 = _nc_hw3(output['x_hat'])
    imgt3 = _nc_hw3(img_target)
    xhd3 = _nc_hw3(output['x_hat_distortion'])
    imgd3 = _nc_hw3(img_distortion)
    y3 = _nc_hw3(output['y_hat_clear'])
    liky3 = _nc_hw3(output['likelihoods']['y'])

    likz = output['likelihoods']['z']
    z_per_n = int(likz.size) // likz.shape[0]
    if z_per_n % 128 == 0:
        likz3 = likz.reshape(N, z_per_n // 128, 128)          # lane-dense
    else:
        likz3 = likz.reshape(N, 1, z_per_n)
    Rz, LZ = likz3.shape[1], likz3.shape[2]

    # Tiny resident decoder params (no TL-scaled bias stream).
    wT = jnp.transpose(dec_w).astype(jnp.float32)             # (C, Cy)
    b128 = jnp.broadcast_to(dec_b.astype(jnp.float32)[:, None], (C, 128))

    def spatial_idx(n, p, t):
        tile = jnp.minimum(p * TPP + t, T_LAST)               # clamp padding tiles
        return (n, 0, tile)

    img_spec = pl.BlockSpec((1, C, TL), spatial_idx)
    lat_spec = pl.BlockSpec((1, Cy, TL), spatial_idx)

    inputs = (wT, b128, y3, imgc3, xh3, imgt3, xhd3, imgd3, liky3, likz3)

    # Explicit scoped-VMEM limit: v5e's 16 MiB default would otherwise reject
    # large tiles; cap well under v7x's 64 MiB physical.
    fixed_bytes = (2 * _pad8(Rz) * _pad128(LZ) * likz.dtype.itemsize
                   + _pad8(C) * _pad128(Cy) * 4 + _pad8(C) * 128 * 4
                   + 2 * 8 * 128 * 4)
    est_vmem = per_lane_bytes * TL + fixed_bytes
    vmem_limit = int(min(48 << 20, max(32 << 20, int(1.5 * est_vmem))))

    n_logs = (Cy // 2 if use_pair else Cy)
    flops = (2 * C * Cy * N * HW + 12 * N * C * HW
             + (Cy if use_pair else 0) * N * HW + lly_groups * lly_rows * N * HW)
    transcendentals = n_logs * N * HW + N * NP * z_per_n
    bytes_accessed = (sum(int(a.size) * a.dtype.itemsize for a in inputs)
                      + N * NP * 128 * 4)

    kernel = _make_kernel(cy=Cy, tl=TL, tpp=TPP, hw=HW, needs_mask=needs_mask,
                          use_pair=use_pair, lly_groups=lly_groups,
                          lly_rows=lly_rows)

    grid_spec = pltpu.PrefetchScalarGridSpec(
        num_scalar_prefetch=0,
        grid=(N, NP, TPP),
        in_specs=[
            pl.BlockSpec((C, Cy), lambda n, p, t: (0, 0)),       # decoder W^T (resident)
            pl.BlockSpec((C, 128), lambda n, p, t: (0, 0)),      # decoder bias (resident)
            lat_spec,                                            # y_hat_clear
            img_spec,                                            # img_clear
            img_spec,                                            # x_hat
            img_spec,                                            # img_target
            img_spec,                                            # x_hat_distortion
            img_spec,                                            # img_distortion
            lat_spec,                                            # likelihoods['y']
            pl.BlockSpec((1, Rz, LZ), lambda n, p, t: (n, 0, 0)),  # likelihoods['z']
        ],
        out_specs=pl.BlockSpec((1, 1, 128), lambda n, p, t: (n, p, 0)),
        scratch_shapes=[pltpu.VMEM((C, TL), jnp.float32),        # weighted SSE acc
                        pltpu.VMEM((lly_rows, TL), jnp.float32)],  # folded log p_y acc
    )

    partials = pl.pallas_call(
        kernel,
        out_shape=jax.ShapeDtypeStruct((N, NP, 128), jnp.float32),
        grid_spec=grid_spec,
        compiler_params=pltpu.CompilerParams(
            dimension_semantics=("parallel", "parallel", "arbitrary"),
            vmem_limit_bytes=vmem_limit),
        cost_estimate=pl.CostEstimate(flops=flops,
                                      transcendentals=transcendentals,
                                      bytes_accessed=bytes_accessed),
    )(*inputs)

    sums = jnp.sum(partials.reshape(-1, 128), axis=0)   # reduce (n, p) rows in JAX
    sse_w, ll_y, ll_z = sums[0], sums[1], sums[2]

    n_img_elems = N * C * H * W
    out = {}
    out['bpp_loss'] = (ll_y + ll_z) / (-math.log(2) * num_pixels)
    out['mse_loss'] = sse_w / (5.0 * n_img_elems)        # (3*l1 + l2 + l3) / 5
    distortion = (255.0 ** 2) * out['mse_loss']
    out['loss'] = lmbda * distortion + out['bpp_loss']
    return out


def _reference(output, img_target, img_clear, img_distortion, dec_w, dec_b,
               lmbda=0.01):
    # Pure-JAX reference for verification only.
    N, C, H, W = img_target.shape
    num_pixels = N * H * W
    y = output['y_hat_clear'].astype(jnp.float32)
    x_clear = jnp.einsum('nkhw,kc->nchw', y, dec_w.astype(jnp.float32)) \
        + dec_b.astype(jnp.float32)[None, :, None, None]
    l1 = jnp.mean((output['x_hat'] - img_target) ** 2)
    l2 = jnp.mean((x_clear - img_clear) ** 2)
    l3 = jnp.mean((output['x_hat_distortion'] - img_distortion) ** 2)
    bpp = sum(jnp.sum(jnp.log(v)) / (-math.log(2) * num_pixels)
              for v in output['likelihoods'].values())
    mse = (3 * l1 + l2 + l3) / 5
    return {'bpp_loss': bpp, 'mse_loss': mse,
            'loss': lmbda * (255.0 ** 2) * mse + bpp}


def _make_inputs(key, N, C, H, W, Cy, Cz, Hz, Wz):
    keys = jax.random.split(key, 10)
    img_target = jax.random.uniform(keys[0], (N, C, H, W), jnp.float32)
    img_clear = jax.random.uniform(keys[1], (N, C, H, W), jnp.float32)
    img_distortion = jax.random.uniform(keys[2], (N, C, H, W), jnp.float32)
    output = {
        'x_hat': jax.random.uniform(keys[3], (N, C, H, W), jnp.float32),
        'x_hat_distortion': jax.random.uniform(keys[4], (N, C, H, W), jnp.float32),
        'y_hat_clear': jax.random.normal(keys[5], (N, Cy, H, W), jnp.float32),
        'likelihoods': {
            'y': jax.random.uniform(keys[6], (N, Cy, H, W), jnp.float32,
                                    minval=0.05, maxval=1.0),
            'z': jax.random.uniform(keys[7], (N, Cz, Hz, Wz), jnp.float32,
                                    minval=0.05, maxval=1.0),
        },
    }
    dec_w = jax.random.normal(keys[8], (Cy, C), jnp.float32) * 0.1
    dec_b = jax.random.normal(keys[9], (C,), jnp.float32) * 0.01
    return output, img_target, img_clear, img_distortion, dec_w, dec_b


if __name__ == "__main__":
    # Test 1: even batch, 128-aligned spatial extent (single-tile fast path).
    args1 = _make_inputs(jax.random.PRNGKey(0), N=2, C=3, H=16, W=16,
                         Cy=32, Cz=16, Hz=4, Wz=4)
    out1 = multi_branch_rd_loss(*args1, lmbda=0.01)
    out1 = jax.tree_util.tree_map(jax.block_until_ready, out1)
    ref1 = _reference(*args1)
    for k in ('bpp_loss', 'mse_loss', 'loss'):
        assert jnp.allclose(out1[k], ref1[k], rtol=1e-4, atol=1e-5), (k, out1[k], ref1[k])

    # Test 2: N=1 (2-way parallel tile split for v7x) + ragged H*W=324
    # (lane-masked tail + padding tile); small lane_tile_cap forces tiling.
    args2 = _make_inputs(jax.random.PRNGKey(1), N=1, C=3, H=18, W=18,
                         Cy=32, Cz=16, Hz=3, Wz=3)
    out2 = multi_branch_rd_loss(*args2, lmbda=0.01, lane_tile_cap=128)
    out2 = jax.tree_util.tree_map(jax.block_until_ready, out2)
    ref2 = _reference(*args2)
    for k in ('bpp_loss', 'mse_loss', 'loss'):
        assert jnp.allclose(out2[k], ref2[k], rtol=1e-4, atol=1e-5), (k, out2[k], ref2[k])

    print("KERNEL_OK")
</pallas_src>

<mosaic_0001>
module attributes {stable_mosaic.version = 11 : i64} {
  func.func @kernel(%arg0: i32, %arg1: i32, %arg2: i32, %arg3: memref<3x32xf32, #tpu.memory_space<vmem>>, %arg4: memref<3x128xf32, #tpu.memory_space<vmem>>, %arg5: memref<1x32x256xf32, #tpu.memory_space<vmem>>, %arg6: memref<1x3x256xf32, #tpu.memory_space<vmem>>, %arg7: memref<1x3x256xf32, #tpu.memory_space<vmem>>, %arg8: memref<1x3x256xf32, #tpu.memory_space<vmem>>, %arg9: memref<1x3x256xf32, #tpu.memory_space<vmem>>, %arg10: memref<1x3x256xf32, #tpu.memory_space<vmem>>, %arg11: memref<1x32x256xf32, #tpu.memory_space<vmem>>, %arg12: memref<1x2x128xf32, #tpu.memory_space<vmem>>, %arg13: memref<1x1x128xf32, #tpu.memory_space<vmem>>, %arg14: memref<3x256xf32, #tpu.memory_space<vmem>>, %arg15: memref<8x256xf32, #tpu.memory_space<vmem>>) attributes {dimension_semantics = [#tpu.dimension_semantics<parallel>, #tpu.dimension_semantics<parallel>, #tpu.dimension_semantics<arbitrary>], iteration_bounds = array<i64: 2, 1, 1>, scalar_prefetch = 0 : i64, scratch_operands = 2 : i64, tpu.core_type = #tpu.core_type<tc>, window_params = [{pipeline_mode = #tpu.pipeline_mode<synchronous>, transform_indices = @transform_0, window_bounds = array<i64: 3, 32>}, {pipeline_mode = #tpu.pipeline_mode<synchronous>, transform_indices = @transform_1, window_bounds = array<i64: 3, 128>}, {transform_indices = @transform_2, window_bounds = array<i64: 1, 32, 256>}, {transform_indices = @transform_3, window_bounds = array<i64: 1, 3, 256>}, {transform_indices = @transform_4, window_bounds = array<i64: 1, 3, 256>}, {transform_indices = @transform_5, window_bounds = array<i64: 1, 3, 256>}, {transform_indices = @transform_6, window_bounds = array<i64: 1, 3, 256>}, {transform_indices = @transform_7, window_bounds = array<i64: 1, 3, 256>}, {transform_indices = @transform_8, window_bounds = array<i64: 1, 32, 256>}, {transform_indices = @transform_9, window_bounds = array<i64: 1, 2, 128>}, {transform_indices = @transform_10, window_bounds = array<i64: 1, 1, 128>}]} {
    %c0_i32 = arith.constant 0 : i32
    %0 = arith.cmpi eq, %arg2, %c0_i32 : i32
    %1 = arith.extui %0 : i1 to i32
    %c0_i32_0 = arith.constant 0 : i32
    %2 = arith.cmpi ne, %1, %c0_i32_0 : i32
    scf.if %2 {
      %cst_36 = arith.constant 0.000000e+00 : f32
      %49 = vector.broadcast %cst_36 : f32 to vector<3x256xf32>
      %c0_37 = arith.constant 0 : index
      %c0_38 = arith.constant 0 : index
      %50 = vector.load %arg14[%c0_37, %c0_38] : memref<3x256xf32, #tpu.memory_space<vmem>>, vector<3x256xf32>
      tpu.vector_store %arg14[%c0_37, %c0_38], %49 {strides = array<i32>} : memref<3x256xf32, #tpu.memory_space<vmem>>, vector<3x256xf32>,
      %cst_39 = arith.constant 0.000000e+00 : f32
      %51 = vector.broadcast %cst_39 : f32 to vector<8x256xf32>
      %c0_40 = arith.constant 0 : index
      %c0_41 = arith.constant 0 : index
      %52 = vector.load %arg15[%c0_40, %c0_41] : memref<8x256xf32, #tpu.memory_space<vmem>>, vector<8x256xf32>
      tpu.vector_store %arg15[%c0_40, %c0_41], %51 {strides = array<i32>} : memref<8x256xf32, #tpu.memory_space<vmem>>, vector<8x256xf32>,
    } else {
    }
    %c0 = arith.constant 0 : index
    %c0_1 = arith.constant 0 : index
    %c0_2 = arith.constant 0 : index
    %3 = vector.load %arg5[%c0, %c0_1, %c0_2] : memref<1x32x256xf32, #tpu.memory_space<vmem>>, vector<1x32x256xf32>
    %4 = vector.shape_cast %3 : vector<1x32x256xf32> to vector<32x256xf32>
    %c0_3 = arith.constant 0 : index
    %c0_4 = arith.constant 0 : index
    %5 = vector.load %arg4[%c0_3, %c0_4] : memref<3x128xf32, #tpu.memory_space<vmem>>, vector<3x128xf32>
    %6 = vector.extract_strided_slice %5 {offsets = [0, 0], sizes = [3, 1], strides = [1, 1]} : vector<3x128xf32> to vector<3x1xf32>
    %c0_5 = arith.constant 0 : index
    %c0_6 = arith.constant 0 : index
    %7 = vector.load %arg3[%c0_5, %c0_6] : memref<3x32xf32, #tpu.memory_space<vmem>>, vector<3x32xf32>
    %cst = arith.constant dense<0.000000e+00> : vector<3x256xf32>
    %8 = tpu.matmul %7, %4, %cst {dimension_numbers = #tpu.dot_dimension_numbers<[1], [0], [0], [1], [0, 0, 1, 1], [], []>} : vector<3x32xf32>, vector<32x256xf32>, vector<3x256xf32> -> vector<3x256xf32>
    %9 = vector.broadcast %6 : vector<3x1xf32> to vector<3x256xf32>
    %10 = arith.addf %8, %9 : vector<3x256xf32>
    %c0_7 = arith.constant 0 : index
    %c0_8 = arith.constant 0 : index
    %c0_9 = arith.constant 0 : index
    %11 = vector.load %arg7[%c0_7, %c0_8, %c0_9] : memref<1x3x256xf32, #tpu.memory_space<vmem>>, vector<1x3x256xf32>
    %12 = vector.shape_cast %11 : vector<1x3x256xf32> to vector<3x256xf32>
    %c0_10 = arith.constant 0 : index
    %c0_11 = arith.constant 0 : index
    %c0_12 = arith.constant 0 : index
    %13 = vector.load %arg8[%c0_10, %c0_11, %c0_12] : memref<1x3x256xf32, #tpu.memory_space<vmem>>, vector<1x3x256xf32>
    %14 = vector.shape_cast %13 : vector<1x3x256xf32> to vector<3x256xf32>
    %15 = arith.subf %12, %14 : vector<3x256xf32>
    %c0_13 = arith.constant 0 : index
    %c0_14 = arith.constant 0 : index
    %c0_15 = arith.constant 0 : index
    %16 = vector.load %arg6[%c0_13, %c0_14, %c0_15] : memref<1x3x256xf32, #tpu.memory_space<vmem>>, vector<1x3x256xf32>
    %17 = vector.shape_cast %16 : vector<1x3x256xf32> to vector<3x256xf32>
    %18 = arith.subf %10, %17 : vector<3x256xf32>
    %c0_16 = arith.constant 0 : index
    %c0_17 = arith.constant 0 : index
    %c0_18 = arith.constant 0 : index
    %19 = vector.load %arg9[%c0_16, %c0_17, %c0_18] : memref<1x3x256xf32, #tpu.memory_space<vmem>>, vector<1x3x256xf32>
    %20 = vector.shape_cast %19 : vector<1x3x256xf32> to vector<3x256xf32>
    %c0_19 = arith.constant 0 : index
    %c0_20 = arith.constant 0 : index
    %c0_21 = arith.constant 0 : index
    %21 = vector.load %arg10[%c0_19, %c0_20, %c0_21] : memref<1x3x256xf32, #tpu.memory_space<vmem>>, vector<1x3x256xf32>
    %22 = vector.shape_cast %21 : vector<1x3x256xf32> to vector<3x256xf32>
    %23 = arith.subf %20, %22 : vector<3x256xf32>
    %24 = arith.mulf %15, %15 : vector<3x256xf32>
    %cst_22 = arith.constant 3.000000e+00 : f32
    %25 = vector.broadcast %cst_22 : f32 to vector<3x256xf32>
    %26 = arith.mulf %25, %24 : vector<3x256xf32>
    %27 = arith.mulf %18, %18 : vector<3x256xf32>
    %28 = arith.addf %26, %27 : vector<3x256xf32>
    %29 = arith.mulf %23, %23 : vector<3x256xf32>
    %30 = arith.addf %28, %29 : vector<3x256xf32>
    %c0_23 = arith.constant 0 : index
    %c0_24 = arith.constant 0 : index
    %31 = vector.load %arg14[%c0_23, %c0_24] : memref<3x256xf32, #tpu.memory_space<vmem>>, vector<3x256xf32>
    %32 = arith.addf %31, %30 : vector<3x256xf32>
    %c0_25 = arith.constant 0 : index
    %c0_26 = arith.constant 0 : index
    %33 = vector.load %arg14[%c0_25, %c0_26] : memref<3x256xf32, #tpu.memory_space<vmem>>, vector<3x256xf32>
    tpu.vector_store %arg14[%c0_25, %c0_26], %32 {strides = array<i32>} : memref<3x256xf32, #tpu.memory_space<vmem>>, vector<3x256xf32>,
    %c0_27 = arith.constant 0 : index
    %c0_28 = arith.constant 0 : index
    %c0_29 = arith.constant 0 : index
    %34 = vector.load %arg11[%c0_27, %c0_28, %c0_29] : memref<1x32x256xf32, #tpu.memory_space<vmem>>, vector<1x32x256xf32>
    %35 = vector.shape_cast %34 : vector<1x32x256xf32> to vector<32x256xf32>
    %36 = vector.extract_strided_slice %35 {offsets = [0, 0], sizes = [16, 256], strides = [1, 1]} : vector<32x256xf32> to vector<16x256xf32>
    %37 = vector.extract_strided_slice %35 {offsets = [16, 0], sizes = [16, 256], strides = [1, 1]} : vector<32x256xf32> to vector<16x256xf32>
    %38 = arith.mulf %36, %37 : vector<16x256xf32>
    %39 = math.log %38 : vector<16x256xf32>
    %40 = vector.extract_strided_slice %39 {offsets = [0, 0], sizes = [8, 256], strides = [1, 1]} : vector<16x256xf32> to vector<8x256xf32>
    %41 = vector.extract_strided_slice %39 {offsets = [8, 0], sizes = [8, 256], strides = [1, 1]} : vector<16x256xf32> to vector<8x256xf32>
    %42 = arith.addf %40, %41 : vector<8x256xf32>
    %c0_30 = arith.constant 0 : index
    %c0_31 = arith.constant 0 : index
    %43 = vector.load %arg15[%c0_30, %c0_31] : memref<8x256xf32, #tpu.memory_space<vmem>>, vector<8x256xf32>
    %44 = arith.addf %43, %42 : vector<8x256xf32>
    %c0_32 = arith.constant 0 : index
    %c0_33 = arith.constant 0 : index
    %45 = vector.load %arg15[%c0_32, %c0_33] : memref<8x256xf32, #tpu.memory_space<vmem>>, vector<8x256xf32>
    tpu.vector_store %arg15[%c0_32, %c0_33], %44 {strides = array<i32>} : memref<8x256xf32, #tpu.memory_space<vmem>>, vector<8x256xf32>,
    %c0_i32_34 = arith.constant 0 : i32
    %46 = arith.cmpi eq, %arg2, %c0_i32_34 : i32
    %47 = arith.extui %46 : i1 to i32
    %c0_i32_35 = arith.constant 0 : i32
    %48 = arith.cmpi ne, %47, %c0_i32_35 : i32
    scf.if %48 {
      %c0_36 = arith.constant 0 : index
      %c0_37 = arith.constant 0 : index
      %49 = vector.load %arg14[%c0_36, %c0_37] : memref<3x256xf32, #tpu.memory_space<vmem>>, vector<3x256xf32>
      %50 = vector.shape_cast %49 : vector<3x256xf32> to vector<1x3x256xf32>
      %cst_38 = arith.constant dense<0.000000e+00> : vector<1xf32>
      %51 = vector.multi_reduction <add>, %50, %cst_38 [1, 2] : vector<1x3x256xf32> to vector<1xf32>
      %52 = vector.shape_cast %51 : vector<1xf32> to vector<1x1x1xf32>
      %53 = vector.extract %52[0, 0, 0] : f32 from vector<1x1x1xf32>
      %c0_39 = arith.constant 0 : index
      %c0_40 = arith.constant 0 : index
      %54 = vector.load %arg15[%c0_39, %c0_40] : memref<8x256xf32, #tpu.memory_space<vmem>>, vector<8x256xf32>
      %55 = vector.shape_cast %54 : vector<8x256xf32> to vector<1x8x256xf32>
      %cst_41 = arith.constant dense<0.000000e+00> : vector<1xf32>
      %56 = vector.multi_reduction <add>, %55, %cst_41 [1, 2] : vector<1x8x256xf32> to vector<1xf32>
      %57 = vector.shape_cast %56 : vector<1xf32> to vector<1x1x1xf32>
      %58 = vector.extract %57[0, 0, 0] : f32 from vector<1x1x1xf32>
      %c0_42 = arith.constant 0 : index
      %c0_43 = arith.constant 0 : index
      %c0_44 = arith.constant 0 : index
      %59 = vector.load %arg12[%c0_42, %c0_43, %c0_44] : memref<1x2x128xf32, #tpu.memory_space<vmem>>, vector<1x2x128xf32>
      %60 = vector.shape_cast %59 : vector<1x2x128xf32> to vector<2x128xf32>
      %61 = math.log %60 : vector<2x128xf32>
      %62 = vector.shape_cast %61 : vector<2x128xf32> to vector<1x2x128xf32>
      %cst_45 = arith.constant dense<0.000000e+00> : vector<1xf32>
      %63 = vector.multi_reduction <add>, %62, %cst_45 [1, 2] : vector<1x2x128xf32> to vector<1xf32>
      %64 = vector.shape_cast %63 : vector<1xf32> to vector<1x1x1xf32>
      %65 = vector.extract %64[0, 0, 0] : f32 from vector<1x1x1xf32>
      %c0_i32_46 = arith.constant 0 : i32
      %66 = arith.cmpi eq, %arg1, %c0_i32_46 : i32
      %cst_47 = arith.constant 0.000000e+00 : f32
      %67 = arith.select %66, %65, %cst_47 : f32
      %68 = tpu.iota {dimensions = array<i32: 2>} : vector<1x1x128xi32>
      %c0_i32_48 = arith.constant 0 : i32
      %69 = vector.broadcast %c0_i32_48 : i32 to vector<1x1x128xi32>
      %70 = arith.cmpi eq, %68, %69 : vector<1x1x128xi32>
      %cst_49 = arith.constant 0.000000e+00 : f32
      %71 = vector.broadcast %53 : f32 to vector<1x1x128xf32>
      %72 = vector.broadcast %cst_49 : f32 to vector<1x1x128xf32>
      %73 = arith.select %70, %71, %72 : vector<1x1x128xi1>, vector<1x1x128xf32>
      %c1_i32 = arith.constant 1 : i32
      %74 = vector.broadcast %c1_i32 : i32 to vector<1x1x128xi32>
      %75 = arith.cmpi eq, %68, %74 : vector<1x1x128xi32>
      %cst_50 = arith.constant 0.000000e+00 : f32
      %76 = vector.broadcast %58 : f32 to vector<1x1x128xf32>
      %77 = vector.broadcast %cst_50 : f32 to vector<1x1x128xf32>
      %78 = arith.select %75, %76, %77 : vector<1x1x128xi1>, vector<1x1x128xf32>
      %79 = arith.addf %73, %78 : vector<1x1x128xf32>
      %c2_i32 = arith.constant 2 : i32
      %80 = vector.broadcast %c2_i32 : i32 to vector<1x1x128xi32>
      %81 = arith.cmpi eq, %68, %80 : vector<1x1x128xi32>
      %cst_51 = arith.constant 0.000000e+00 : f32
      %82 = vector.broadcast %67 : f32 to vector<1x1x128xf32>
      %83 = vector.broadcast %cst_51 : f32 to vector<1x1x128xf32>
      %84 = arith.select %81, %82, %83 : vector<1x1x128xi1>, vector<1x1x128xf32>
      %85 = arith.addf %79, %84 : vector<1x1x128xf32>
      %c0_52 = arith.constant 0 : index
      %c0_53 = arith.constant 0 : index
      %c0_54 = arith.constant 0 : index
      %86 = vector.load %arg13[%c0_52, %c0_53, %c0_54] : memref<1x1x128xf32, #tpu.memory_space<vmem>>, vector<1x1x128xf32>
      tpu.vector_store %arg13[%c0_52, %c0_53, %c0_54], %85 {strides = array<i32>} : memref<1x1x128xf32, #tpu.memory_space<vmem>>, vector<1x1x128xf32>,
    } else {
    }
    return
  }
  func.func @transform_0(%arg0: i32, %arg1: i32, %arg2: i32) -> (i32, i32) {
    %c0_i32 = arith.constant 0 : i32
    %c0_i32_0 = arith.constant 0 : i32
    %c0_i32_1 = arith.constant 0 : i32
    return %c0_i32, %c0_i32_0 : i32, i32
  }
  func.func @transform_1(%arg0: i32, %arg1: i32, %arg2: i32) -> (i32, i32) {
    %c0_i32 = arith.constant 0 : i32
    %c0_i32_0 = arith.constant 0 : i32
    %c0_i32_1 = arith.constant 0 : i32
    return %c0_i32, %c0_i32_0 : i32, i32
  }
  func.func @transform_2(%arg0: i32, %arg1: i32, %arg2: i32) -> (i32, i32, i32) {
    %c1_i32 = arith.constant 1 : i32
    %0 = arith.muli %arg1, %c1_i32 : i32
    %1 = arith.addi %0, %arg2 : i32
    %c0_i32 = arith.constant 0 : i32
    %2 = arith.minsi %1, %c0_i32 : i32
    %c0_i32_0 = arith.constant 0 : i32
    %c0_i32_1 = arith.constant 0 : i32
    return %arg0, %c0_i32_0, %2 : i32, i32, i32
  }
  func.func @transform_3(%arg0: i32, %arg1: i32, %arg2: i32) -> (i32, i32, i32) {
    %c1_i32 = arith.constant 1 : i32
    %0 = arith.muli %arg1, %c1_i32 : i32
    %1 = arith.addi %0, %arg2 : i32
    %c0_i32 = arith.constant 0 : i32
    %2 = arith.minsi %1, %c0_i32 : i32
    %c0_i32_0 = arith.constant 0 : i32
    %c0_i32_1 = arith.constant 0 : i32
    return %arg0, %c0_i32_0, %2 : i32, i32, i32
  }
  func.func @transform_4(%arg0: i32, %arg1: i32, %arg2: i32) -> (i32, i32, i32) {
    %c1_i32 = arith.constant 1 : i32
    %0 = arith.muli %arg1, %c1_i32 : i32
    %1 = arith.addi %0, %arg2 : i32
    %c0_i32 = arith.constant 0 : i32
    %2 = arith.minsi %1, %c0_i32 : i32
    %c0_i32_0 = arith.constant 0 : i32
    %c0_i32_1 = arith.constant 0 : i32
    return %arg0, %c0_i32_0, %2 : i32, i32, i32
  }
  func.func @transform_5(%arg0: i32, %arg1: i32, %arg2: i32) -> (i32, i32, i32) {
    %c1_i32 = arith.constant 1 : i32
    %0 = arith.muli %arg1, %c1_i32 : i32
    %1 = arith.addi %0, %arg2 : i32
    %c0_i32 = arith.constant 0 : i32
    %2 = arith.minsi %1, %c0_i32 : i32
    %c0_i32_0 = arith.constant 0 : i32
    %c0_i32_1 = arith.constant 0 : i32
    return %arg0, %c0_i32_0, %2 : i32, i32, i32
  }
  func.func @transform_6(%arg0: i32, %arg1: i32, %arg2: i32) -> (i32, i32, i32) {
    %c1_i32 = arith.constant 1 : i32
    %0 = arith.muli %arg1, %c1_i32 : i32
    %1 = arith.addi %0, %arg2 : i32
    %c0_i32 = arith.constant 0 : i32
    %2 = arith.minsi %1, %c0_i32 : i32
    %c0_i32_0 = arith.constant 0 : i32
    %c0_i32_1 = arith.constant 0 : i32
    return %arg0, %c0_i32_0, %2 : i32, i32, i32
  }
  func.func @transform_7(%arg0: i32, %arg1: i32, %arg2: i32) -> (i32, i32, i32) {
    %c1_i32 = arith.constant 1 : i32
    %0 = arith.muli %arg1, %c1_i32 : i32
    %1 = arith.addi %0, %arg2 : i32
    %c0_i32 = arith.constant 0 : i32
    %2 = arith.minsi %1, %c0_i32 : i32
    %c0_i32_0 = arith.constant 0 : i32
    %c0_i32_1 = arith.constant 0 : i32
    return %arg0, %c0_i32_0, %2 : i32, i32, i32
  }
  func.func @transform_8(%arg0: i32, %arg1: i32, %arg2: i32) -> (i32, i32, i32) {
    %c1_i32 = arith.constant 1 : i32
    %0 = arith.muli %arg1, %c1_i32 : i32
    %1 = arith.addi %0, %arg2 : i32
    %c0_i32 = arith.constant 0 : i32
    %2 = arith.minsi %1, %c0_i32 : i32
    %c0_i32_0 = arith.constant 0 : i32
    %c0_i32_1 = arith.constant 0 : i32
    return %arg0, %c0_i32_0, %2 : i32, i32, i32
  }
  func.func @transform_9(%arg0: i32, %arg1: i32, %arg2: i32) -> (i32, i32, i32) {
    %c0_i32 = arith.constant 0 : i32
    %c0_i32_0 = arith.constant 0 : i32
    %c0_i32_1 = arith.constant 0 : i32
    return %arg0, %c0_i32, %c0_i32_0 : i32, i32, i32
  }
  func.func @transform_10(%arg0: i32, %arg1: i32, %arg2: i32) -> (i32, i32, i32) {
    %c0_i32 = arith.constant 0 : i32
    %c0_i32_0 = arith.constant 0 : i32
    return %arg0, %arg1, %c0_i32 : i32, i32, i32
  }
}

</mosaic_0001>

<llo_original>
// kernel: tpu_custom_call.1
$region0: #{tpu_custom_call.1}
  #allocation0 [shape = 'u32[]', space=smem, size = 0x4, offset = 0x4, fixed_abs, tag = 'smem constant byte address 0x4 - core index']
  #allocation1 [shape = 'u32[144,128]{1,0:T(1,128)}', space=vmem, size = 0x12000, scoped, tag = 'internal scratch']
  #allocation2 [shape = 'f32[3,256]{1,0:T(4,128)}', space=vmem, size = 0x1000, scoped, tag = 'scratch operand']
  #allocation3 [shape = 'f32[8,256]{1,0:T(8,128)}', space=vmem, size = 0x2000, scoped, tag = 'scratch operand']
  %s0 = inlined_call_operand.hbm [shape: f32[3,32], index: 0, kind: input, shape index: {}]
  %s1 = inlined_call_operand.hbm [shape: f32[3,128], index: 1, kind: input, shape index: {}]
  %s2 = inlined_call_operand.vmem [shape: f32[2,32,256], index: 2, kind: input, shape index: {}]
  %s3 = inlined_call_operand.vmem [shape: f32[2,3,256], index: 3, kind: input, shape index: {}]
  %s4 = inlined_call_operand.vmem [shape: f32[2,3,256], index: 4, kind: input, shape index: {}]
  %s5 = inlined_call_operand.vmem [shape: f32[2,3,256], index: 5, kind: input, shape index: {}]
  %s6 = inlined_call_operand.vmem [shape: f32[2,3,256], index: 6, kind: input, shape index: {}]
  %s7 = inlined_call_operand.vmem [shape: f32[2,3,256], index: 7, kind: input, shape index: {}]
  %s8 = inlined_call_operand.hbm [shape: f32[2,32,256], index: 8, kind: input, shape index: {}]
  %s9 = inlined_call_operand.vmem [shape: f32[2,2,128], index: 9, kind: input, shape index: {}]
  %s10 = inlined_call_operand.hbm [shape: f32[2,1,128], index: 10, kind: output, shape index: {}]
  %s11 = sld [smem:[#allocation0]]
  $region93: #{tpu_custom_call.1} parent=0
    _
  %s13 = ssub.s32 1, %s11
  %s14 = scalar_select 0, %s13, %s11
  $region1: #{tpu_custom_call.1} parent=0
    #allocation4 [shape = 'u8[2048]{0}', space=vmem, size = 0x800, scoped, tag = 'input window, operand 0, single buffered']
    #allocation5 [shape = 's32[2]{0}', space=sflag, size = 0x8, scoped, tag = 'scoped memory for tpu_custom_call.1']
    #allocation6 [shape = 's32[2]{0}', space=sflag, size = 0x8, scoped, tag = 'scoped memory for tpu_custom_call.1']
    #allocation7 [shape = 'u8[2048]{0}', space=vmem, size = 0x800, scoped, tag = 'input window, operand 1, single buffered']
    #allocation8 [shape = 's32[1]{0}', space=sflag, size = 0x4, scoped, tag = 'scoped memory for tpu_custom_call.1']
    #allocation9 [shape = 'u8[65536]{0}', space=vmem, size = 0x10000, scoped, tag = 'input window, operand 8']
    #allocation10 [shape = 'u8[1024]{0}', space=vmem, size = 0x400, scoped, tag = 'output window, operand 0']
    %15 = vsyncpa [#allocation5], 0
    %16 = vsyncpa [#allocation8], 0
    %17 = vsyncpa [#allocation6], 0
    %s18 = scalar_lea.sflag [#allocation6], 1
    %19 = vsyncpa %s18, 0
    loop: start=0, step=1, limit=4
    $region2: #{tpu_custom_call.1} parent=1 // loop_pre_header
      _
    $region3: #{tpu_custom_call.1} parent=1 // loop_header
      %s21 = sphi 0, %s25
      %p22 = scmp.ge.s32.totalorder %s21, 4
      %s28 = sphi 0, %s47
      %s29 = sphi 0, %s43
      %s30 = sphi 0, %s39
      %s31 = sphi 0, %s28
      %s32 = sphi 0, %s29
      %s33 = sphi 0, %s30
      %s34 = sphi 0, %s31
      %s35 = sphi 0, %s32
      %s36 = sphi 0, %s33
      %s48 = sphi 0, %s48
      %s50 = sphi 0, %s48
      %s51 = sphi 0, %s50
      %s65 = sphi 0, %s51
      %s69 = sphi 0, %s69
      %s71 = sphi 0, %s69
      %s72 = sphi 0, %s71
      %s86 = sphi 0, %s72
      %s100 = sphi 0, %s102
      %s103 = sphi 0, %s100
      %s104 = sphi 0, %s103
      %s120 = sphi 0, %s104
      %s134 = sphi 0, %s136
      %s137 = sphi 0, %s134
      %s138 = sphi 0, %s137
      %s154 = sphi 0, %s138
      %s168 = sphi 0, %s170
      %s171 = sphi 0, %s168
      %s172 = sphi 0, %s171
      %s188 = sphi 0, %s172
      %s202 = sphi 0, %s204
      %s205 = sphi 0, %s202
      %s206 = sphi 0, %s205
      %s222 = sphi 0, %s206
      %s236 = sphi 0, %s238
      %s239 = sphi 0, %s236
      %s240 = sphi 0, %s239
      %s256 = sphi 0, %s240
      %s270 = sphi 0, %s272
      %s273 = sphi 0, %s270
      %s274 = sphi 0, %s273
      %s290 = sphi 0, %s274
      %s304 = sphi 0, %s306
      %s307 = sphi 0, %s304
      %s308 = sphi 0, %s307
      %s324 = sphi 0, %s308
      %s330 = sphi 0, %s332
      %s333 = sphi 0, %s330
      %s334 = sphi 0, %s333
      %s350 = sphi 0, %s334
      %s358 = sphi 0, %s360
      %s361 = sphi 0, %s358
      %s362 = sphi 0, %s361
      %s378 = sphi 0, %s362
    $region4: #{tpu_custom_call.1} parent=1 // loop_header_branch
      %24 = sbr.rel (%p22) target = $region8
    $region5: #{tpu_custom_call.1} parent=1 // loop_body
      %s26 = ssub.s32 %s21, 1
      %s27 = ssub.s32 %s21, 2
      %s37 = sadd.s32 1, %s30
      %p38 = scmp.ge.s32.totalorder %s37, 1
      %s39 = scalar_select %p38, 0, %s37
      %s40 = sadd.s32 1, %s29
      %s41 = scalar_select %p38, %s40, %s29
      %p42 = scmp.ge.s32.totalorder %s41, 1
      %s43 = scalar_select %p42, 0, %s41
      %s44 = sadd.s32 1, %s28
      %s45 = scalar_select %p42, %s44, %s28
      %p46 = scmp.ge.s32.totalorder %s45, 2
      %s47 = scalar_select %p46, 0, %s45
      %s49 = sadd.s32 %s48, 1
      %p52 = scmp.eq.s32.totalorder %s21, 1
      %p53 = scmp.ne.s32.totalorder %s48, %s50
      %p54 = scmp.eq.s32.totalorder %s21, 0
      %p55 = por %p53, %p54
      %p56 = scmp.ne.s32.totalorder %s48, %s50
      %p57 = scmp.eq.s32.totalorder %s26, 1
      %p58 = por %p56, %p57
      %p59 = scmp.ne.s32.totalorder %s50, %s51
      %p60 = scmp.eq.s32.totalorder %s26, 0
      %p61 = por %p59, %p60
      %p62 = scmp.ne.s32.totalorder %s50, %s51
      %p63 = scmp.eq.s32.totalorder %s27, 1
      %p64 = por %p62, %p63
      %p66 = scmp.ne.s32.totalorder %s51, %s65
      %p67 = scmp.eq.s32.totalorder %s27, 0
      %p68 = por %p66, %p67
      %s70 = sadd.s32 %s69, 1
      %p73 = scmp.eq.s32.totalorder %s21, 1
      %p74 = scmp.ne.s32.totalorder %s69, %s71
      %p75 = scmp.eq.s32.totalorder %s21, 0
      %p76 = por %p74, %p75
      %p77 = scmp.ne.s32.totalorder %s69, %s71
      %p78 = scmp.eq.s32.totalorder %s26, 1
      %p79 = por %p77, %p78
      %p80 = scmp.ne.s32.totalorder %s71, %s72
      %p81 = scmp.eq.s32.totalorder %s26, 0
      %p82 = por %p80, %p81
      %p83 = scmp.ne.s32.totalorder %s71, %s72
      %p84 = scmp.eq.s32.totalorder %s27, 1
      %p85 = por %p83, %p84
      %p87 = scmp.ne.s32.totalorder %s72, %s86
      %p88 = scmp.eq.s32.totalorder %s27, 0
      %p89 = por %p87, %p88
      %s90 = sadd.s32 %s29, %s30
      %p91 = scmp.lt.s32.totalorder %s90, 0
      %s92 = scalar_select %p91, %s90, 0
      %s93 = sadd.s32 %s43, %s39
      %p94 = scmp.lt.s32.totalorder %s93, 0
      %s95 = scalar_select %p94, %s93, 0
      %s96 = ssub.s32 %s28, %s47
      %s97 = ssub.s32 %s92, %s95
      %s98 = sor.u32 %s96, %s97
      %p99 = scmp.eq.s32.totalorder %s98, 0
      %s101 = sadd.s32 %s100, 1
      %s102 = scalar_select %p99, %s100, %s101
      %p105 = pneg %p99
      %p106 = scmp.eq.s32.totalorder %s21, 1
      %p107 = por %p105, %p106
      %p108 = scmp.ne.s32.totalorder %s100, %s103
      %p109 = scmp.eq.s32.totalorder %s21, 0
      %p110 = por %p108, %p109
      %p111 = scmp.ne.s32.totalorder %s100, %s103
      %p112 = scmp.eq.s32.totalorder %s26, 1
      %p113 = por %p111, %p112
      %p114 = scmp.ne.s32.totalorder %s103, %s104
      %p115 = scmp.eq.s32.totalorder %s26, 0
      %p116 = por %p114, %p115
      %p117 = scmp.ne.s32.totalorder %s103, %s104
      %p118 = scmp.eq.s32.totalorder %s27, 1
      %p119 = por %p117, %p118
      %p121 = scmp.ne.s32.totalorder %s104, %s120
      %p122 = scmp.eq.s32.totalorder %s27, 0
      %p123 = por %p121, %p122
      %s124 = sadd.s32 %s29, %s30
      %p125 = scmp.lt.s32.totalorder %s124, 0
      %s126 = scalar_select %p125, %s124, 0
      %s127 = sadd.s32 %s43, %s39
      %p128 = scmp.lt.s32.totalorder %s127, 0
      %s129 = scalar_select %p128, %s127, 0
      %s130 = ssub.s32 %s28, %s47
      %s131 = ssub.s32 %s126, %s129
      %s132 = sor.u32 %s130, %s131
      %p133 = scmp.eq.s32.totalorder %s132, 0
      %s135 = sadd.s32 %s134, 1
      %s136 = scalar_select %p133, %s134, %s135
      %p139 = pneg %p133
      %p140 = scmp.eq.s32.totalorder %s21, 1
      %p141 = por %p139, %p140
      %p142 = scmp.ne.s32.totalorder %s134, %s137
      %p143 = scmp.eq.s32.totalorder %s21, 0
      %p144 = por %p142, %p143
      %p145 = scmp.ne.s32.totalorder %s134, %s137
      %p146 = scmp.eq.s32.totalorder %s26, 1
      %p147 = por %p145, %p146
      %p148 = scmp.ne.s32.totalorder %s137, %s138
      %p149 = scmp.eq.s32.totalorder %s26, 0
      %p150 = por %p148, %p149
      %p151 = scmp.ne.s32.totalorder %s137, %s138
      %p152 = scmp.eq.s32.totalorder %s27, 1
      %p153 = por %p151, %p152
      %p155 = scmp.ne.s32.totalorder %s138, %s154
      %p156 = scmp.eq.s32.totalorder %s27, 0
      %p157 = por %p155, %p156
      %s158 = sadd.s32 %s29, %s30
      %p159 = scmp.lt.s32.totalorder %s158, 0
      %s160 = scalar_select %p159, %s158, 0
      %s161 = sadd.s32 %s43, %s39
      %p162 = scmp.lt.s32.totalorder %s161, 0
      %s163 = scalar_select %p162, %s161, 0
      %s164 = ssub.s32 %s28, %s47
      %s165 = ssub.s32 %s160, %s163
      %s166 = sor.u32 %s164, %s165
      %p167 = scmp.eq.s32.totalorder %s166, 0
      %s169 = sadd.s32 %s168, 1
      %s170 = scalar_select %p167, %s168, %s169
      %p173 = pneg %p167
      %p174 = scmp.eq.s32.totalorder %s21, 1
      %p175 = por %p173, %p174
      %p176 = scmp.ne.s32.totalorder %s168, %s171
      %p177 = scmp.eq.s32.totalorder %s21, 0
      %p178 = por %p176, %p177
      %p179 = scmp.ne.s32.totalorder %s168, %s171
      %p180 = scmp.eq.s32.totalorder %s26, 1
      %p181 = por %p179, %p180
      %p182 = scmp.ne.s32.totalorder %s171, %s172
      %p183 = scmp.eq.s32.totalorder %s26, 0
      %p184 = por %p182, %p183
      %p185 = scmp.ne.s32.totalorder %s171, %s172
      %p186 = scmp.eq.s32.totalorder %s27, 1
      %p187 = por %p185, %p186
      %p189 = scmp.ne.s32.totalorder %s172, %s188
      %p190 = scmp.eq.s32.totalorder %s27, 0
      %p191 = por %p189, %p190
      %s192 = sadd.s32 %s29, %s30
      %p193 = scmp.lt.s32.totalorder %s192, 0
      %s194 = scalar_select %p193, %s192, 0
      %s195 = sadd.s32 %s43, %s39
      %p196 = scmp.lt.s32.totalorder %s195, 0
      %s197 = scalar_select %p196, %s195, 0
      %s198 = ssub.s32 %s28, %s47
      %s199 = ssub.s32 %s194, %s197
      %s200 = sor.u32 %s198, %s199
      %p201 = scmp.eq.s32.totalorder %s200, 0
      %s203 = sadd.s32 %s202, 1
      %s204 = scalar_select %p201, %s202, %s203
      %p207 = pneg %p201
      %p208 = scmp.eq.s32.totalorder %s21, 1
      %p209 = por %p207, %p208
      %p210 = scmp.ne.s32.totalorder %s202, %s205
      %p211 = scmp.eq.s32.totalorder %s21, 0
      %p212 = por %p210, %p211
      %p213 = scmp.ne.s32.totalorder %s202, %s205
      %p214 = scmp.eq.s32.totalorder %s26, 1
      %p215 = por %p213, %p214
      %p216 = scmp.ne.s32.totalorder %s205, %s206
      %p217 = scmp.eq.s32.totalorder %s26, 0
      %p218 = por %p216, %p217
      %p219 = scmp.ne.s32.totalorder %s205, %s206
      %p220 = scmp.eq.s32.totalorder %s27, 1
      %p221 = por %p219, %p220
      %p223 = scmp.ne.s32.totalorder %s206, %s222
      %p224 = scmp.eq.s32.totalorder %s27, 0
      %p225 = por %p223, %p224
      %s226 = sadd.s32 %s29, %s30
      %p227 = scmp.lt.s32.totalorder %s226, 0
      %s228 = scalar_select %p227, %s226, 0
      %s229 = sadd.s32 %s43, %s39
      %p230 = scmp.lt.s32.totalorder %s229, 0
      %s231 = scalar_select %p230, %s229, 0
      %s232 = ssub.s32 %s28, %s47
      %s233 = ssub.s32 %s228, %s231
      %s234 = sor.u32 %s232, %s233
      %p235 = scmp.eq.s32.totalorder %s234, 0
      %s237 = sadd.s32 %s236, 1
      %s238 = scalar_select %p235, %s236, %s237
      %p241 = pneg %p235
      %p242 = scmp.eq.s32.totalorder %s21, 1
      %p243 = por %p241, %p242
      %p244 = scmp.ne.s32.totalorder %s236, %s239
      %p245 = scmp.eq.s32.totalorder %s21, 0
      %p246 = por %p244, %p245
      %p247 = scmp.ne.s32.totalorder %s236, %s239
      %p248 = scmp.eq.s32.totalorder %s26, 1
      %p249 = por %p247, %p248
      %p250 = scmp.ne.s32.totalorder %s239, %s240
      %p251 = scmp.eq.s32.totalorder %s26, 0
      %p252 = por %p250, %p251
      %p253 = scmp.ne.s32.totalorder %s239, %s240
      %p254 = scmp.eq.s32.totalorder %s27, 1
      %p255 = por %p253, %p254
      %p257 = scmp.ne.s32.totalorder %s240, %s256
      %p258 = scmp.eq.s32.totalorder %s27, 0
      %p259 = por %p257, %p258
      %s260 = sadd.s32 %s29, %s30
      %p261 = scmp.lt.s32.totalorder %s260, 0
      %s262 = scalar_select %p261, %s260, 0
      %s263 = sadd.s32 %s43, %s39
      %p264 = scmp.lt.s32.totalorder %s263, 0
      %s265 = scalar_select %p264, %s263, 0
      %s266 = ssub.s32 %s28, %s47
      %s267 = ssub.s32 %s262, %s265
      %s268 = sor.u32 %s266, %s267
      %p269 = scmp.eq.s32.totalorder %s268, 0
      %s271 = sadd.s32 %s270, 1
      %s272 = scalar_select %p269, %s270, %s271
      %p275 = pneg %p269
      %p276 = scmp.eq.s32.totalorder %s21, 1
      %p277 = por %p275, %p276
      %p278 = scmp.ne.s32.totalorder %s270, %s273
      %p279 = scmp.eq.s32.totalorder %s21, 0
      %p280 = por %p278, %p279
      %p281 = scmp.ne.s32.totalorder %s270, %s273
      %p282 = scmp.eq.s32.totalorder %s26, 1
      %p283 = por %p281, %p282
      %p284 = scmp.ne.s32.totalorder %s273, %s274
      %p285 = scmp.eq.s32.totalorder %s26, 0
      %p286 = por %p284, %p285
      %p287 = scmp.ne.s32.totalorder %s273, %s274
      %p288 = scmp.eq.s32.totalorder %s27, 1
      %p289 = por %p287, %p288
      %p291 = scmp.ne.s32.totalorder %s274, %s290
      %p292 = scmp.eq.s32.totalorder %s27, 0
      %p293 = por %p291, %p292
      %s294 = sadd.s32 %s29, %s30
      %p295 = scmp.lt.s32.totalorder %s294, 0
      %s296 = scalar_select %p295, %s294, 0
      %s297 = sadd.s32 %s43, %s39
      %p298 = scmp.lt.s32.totalorder %s297, 0
      %s299 = scalar_select %p298, %s297, 0
      %s300 = ssub.s32 %s28, %s47
      %s301 = ssub.s32 %s296, %s299
      %s302 = sor.u32 %s300, %s301
      %p303 = scmp.eq.s32.totalorder %s302, 0
      %s305 = sadd.s32 %s304, 1
      %s306 = scalar_select %p303, %s304, %s305
      %p309 = pneg %p303
      %p310 = scmp.eq.s32.totalorder %s21, 1
      %p311 = por %p309, %p310
      %p312 = scmp.ne.s32.totalorder %s304, %s307
      %p313 = scmp.eq.s32.totalorder %s21, 0
      %p314 = por %p312, %p313
      %p315 = scmp.ne.s32.totalorder %s304, %s307
      %p316 = scmp.eq.s32.totalorder %s26, 1
      %p317 = por %p315, %p316
      %p318 = scmp.ne.s32.totalorder %s307, %s308
      %p319 = scmp.eq.s32.totalorder %s26, 0
      %p320 = por %p318, %p319
      %p321 = scmp.ne.s32.totalorder %s307, %s308
      %p322 = scmp.eq.s32.totalorder %s27, 1
      %p323 = por %p321, %p322
      %p325 = scmp.ne.s32.totalorder %s308, %s324
      %p326 = scmp.eq.s32.totalorder %s27, 0
      %p327 = por %p325, %p326
      %s328 = ssub.s32 %s28, %s47
      %p329 = scmp.eq.s32.totalorder %s328, 0
      %s331 = sadd.s32 %s330, 1
      %s332 = scalar_select %p329, %s330, %s331
      %p335 = pneg %p329
      %p336 = scmp.eq.s32.totalorder %s21, 1
      %p337 = por %p335, %p336
      %p338 = scmp.ne.s32.totalorder %s330, %s333
      %p339 = scmp.eq.s32.totalorder %s21, 0
      %p340 = por %p338, %p339
      %p341 = scmp.ne.s32.totalorder %s330, %s333
      %p342 = scmp.eq.s32.totalorder %s26, 1
      %p343 = por %p341, %p342
      %p344 = scmp.ne.s32.totalorder %s333, %s334
      %p345 = scmp.eq.s32.totalorder %s26, 0
      %p346 = por %p344, %p345
      %p347 = scmp.ne.s32.totalorder %s333, %s334
      %p348 = scmp.eq.s32.totalorder %s27, 1
      %p349 = por %p347, %p348
      %p351 = scmp.ne.s32.totalorder %s334, %s350
      %p352 = scmp.eq.s32.totalorder %s27, 0
      %p353 = por %p351, %p352
      %s354 = ssub.s32 %s28, %s47
      %s355 = ssub.s32 %s29, %s43
      %s356 = sor.u32 %s354, %s355
      %p357 = scmp.eq.s32.totalorder %s356, 0
      %s359 = sadd.s32 %s358, 1
      %s360 = scalar_select %p357, %s358, %s359
      %p363 = pneg %p357
      %p364 = scmp.eq.s32.totalorder %s21, 1
      %p365 = por %p363, %p364
      %p366 = scmp.ne.s32.totalorder %s358, %s361
      %p367 = scmp.eq.s32.totalorder %s21, 0
      %p368 = por %p366, %p367
      %p369 = scmp.ne.s32.totalorder %s358, %s361
      %p370 = scmp.eq.s32.totalorder %s26, 1
      %p371 = por %p369, %p370
      %p372 = scmp.ne.s32.totalorder %s361, %s362
      %p373 = scmp.eq.s32.totalorder %s26, 0
      %p374 = por %p372, %p373
      %p375 = scmp.ne.s32.totalorder %s361, %s362
      %p376 = scmp.eq.s32.totalorder %s27, 1
      %p377 = por %p375, %p376
      %p379 = scmp.ne.s32.totalorder %s362, %s378
      %p380 = scmp.eq.s32.totalorder %s27, 0
      %p381 = por %p379, %p380
      %p382 = scmp.le.s32.totalorder 1, %s21
      %p383 = scmp.lt.s32.totalorder %s21, 3
      %p384 = pnand %p382, %p383
      %p385 = pneg %p384
      // Predicated region
      $region9: #{tpu_custom_call.1} parent=5 // pred_check
        _
      $region10: #{tpu_custom_call.1} parent=5 // pred_check_branch
        %387 = sbr.rel (%p384) target = $region12
      $region11: #{tpu_custom_call.1} parent=5 // pred_region
        %s388 = ssub.s32 %s21, 1
        // Predicated region
        $region13: #{tpu_custom_call.1} parent=11 // pred_check
          %p389 = pneg %p61
        $region14: #{tpu_custom_call.1} parent=11 // pred_check_branch
          %391 = sbr.rel (%p389) target = $region16
        $region15: #{tpu_custom_call.1} parent=11 // pred_region
          %s393 = ssub.s32 64, 64
          %394 = vsyncadd [#allocation5], %s393
          %s396 = sshll.u32 [#allocation4], 4
          %s397 = int_to_ptr.vmem [resolvable:$true] %s396
          %399 = dma.hbm_to_vmem [thread:$0]  %s0, 64, %s397, [#allocation5]
        $region16: #{tpu_custom_call.1} parent=11 // pred_fallthru
          _
        // Predicated region
        $region17: #{tpu_custom_call.1} parent=11 // pred_check
          %p400 = pneg %p82
        $region18: #{tpu_custom_call.1} parent=11 // pred_check_branch
          %402 = sbr.rel (%p400) target = $region20
        $region19: #{tpu_custom_call.1} parent=11 // pred_region
          %s404 = ssub.s32 64, 64
          %405 = vsyncadd [#allocation8], %s404
          %s407 = sshll.u32 [#allocation7], 4
          %s408 = int_to_ptr.vmem [resolvable:$true] %s407
          %410 = dma.hbm_to_vmem [thread:$0]  %s1, 64, %s408, [#allocation8]
        $region20: #{tpu_custom_call.1} parent=11 // pred_fallthru
          _
      $region12: #{tpu_custom_call.1} parent=5 // pred_fallthru
        _
      %p411 = scmp.lt.s32.totalorder %s21, 2
      // Predicated region
      $region21: #{tpu_custom_call.1} parent=5 // pred_check
        %p412 = pneg %p411
      $region22: #{tpu_custom_call.1} parent=5 // pred_check_branch
        %414 = sbr.rel (%p412) target = $region24
      $region23: #{tpu_custom_call.1} parent=5 // pred_region
        // Predicated region
        $region25: #{tpu_custom_call.1} parent=23 // pred_check
          %p415 = pneg %p110
        $region26: #{tpu_custom_call.1} parent=23 // pred_check_branch
          %417 = sbr.rel (%p415) target = $region28
        $region27: #{tpu_custom_call.1} parent=23 // pred_region
          %s418 = sadd.s32 %s29, %s30
          %p419 = scmp.lt.s32.totalorder %s418, 0
          %s420 = scalar_select %p419, %s418, 0
          %s421 = smul.u32 2, %s420
          %p422 = scmp.lt.s32.totalorder %s28, 1
          %s423 = scalar_select %p422, %s28, 1
          %p424 = scmp.lt.s32.totalorder %s421, 1
          %s425 = scalar_select %p424, %s421, 1
          %s426 = smul.addr %s423, 8
          %s427 = sadd.s32 %s425, %s426
          %s428 = smul.addr %s427, 8
          %s429 = scalar_lea.vmem %s2, %s428
          %s430 = sadd.s32 %s29, %s30
          %p431 = scmp.lt.s32.totalorder %s430, 0
          %s432 = scalar_select %p431, %s430, 0
          %s433 = smul.u32 2, %s432
        $region28: #{tpu_custom_call.1} parent=23 // pred_fallthru
          _
        // Predicated region
        $region29: #{tpu_custom_call.1} parent=23 // pred_check
          %p434 = pneg %p144
        $region30: #{tpu_custom_call.1} parent=23 // pred_check_branch
          %436 = sbr.rel (%p434) target = $region32
        $region31: #{tpu_custom_call.1} parent=23 // pred_region
          %s437 = sadd.s32 %s29, %s30
          %p438 = scmp.lt.s32.totalorder %s437, 0
          %s439 = scalar_select %p438, %s437, 0
          %s440 = smul.u32 2, %s439
          %p441 = scmp.lt.s32.totalorder %s28, 1
          %s442 = scalar_select %p441, %s28, 1
          %p443 = scmp.lt.s32.totalorder %s440, 1
          %s444 = scalar_select %p443, %s440, 1
          %s445 = smul.addr %s442, 2
          %s446 = sadd.s32 %s444, %s445
          %s447 = smul.addr %s446, 4
          %s448 = scalar_lea.vmem %s3, %s447
          %s449 = sadd.s32 %s29, %s30
          %p450 = scmp.lt.s32.totalorder %s449, 0
          %s451 = scalar_select %p450, %s449, 0
          %s452 = smul.u32 2, %s451
        $region32: #{tpu_custom_call.1} parent=23 // pred_fallthru
          _
        // Predicated region
        $region33: #{tpu_custom_call.1} parent=23 // pred_check
          %p453 = pneg %p178
        $region34: #{tpu_custom_call.1} parent=23 // pred_check_branch
          %455 = sbr.rel (%p453) target = $region36
        $region35: #{tpu_custom_call.1} parent=23 // pred_region
          %s456 = sadd.s32 %s29, %s30
          %p457 = scmp.lt.s32.totalorder %s456, 0
          %s458 = scalar_select %p457, %s456, 0
          %s459 = smul.u32 2, %s458
          %p460 = scmp.lt.s32.totalorder %s28, 1
          %s461 = scalar_select %p460, %s28, 1
          %p462 = scmp.lt.s32.totalorder %s459, 1
          %s463 = scalar_select %p462, %s459, 1
          %s464 = smul.addr %s461, 2
          %s465 = sadd.s32 %s463, %s464
          %s466 = smul.addr %s465, 4
          %s467 = scalar_lea.vmem %s4, %s466
          %s468 = sadd.s32 %s29, %s30
          %p469 = scmp.lt.s32.totalorder %s468, 0
          %s470 = scalar_select %p469, %s468, 0
          %s471 = smul.u32 2, %s470
        $region36: #{tpu_custom_call.1} parent=23 // pred_fallthru
          _
        // Predicated region
        $region37: #{tpu_custom_call.1} parent=23 // pred_check
          %p472 = pneg %p212
        $region38: #{tpu_custom_call.1} parent=23 // pred_check_branch
          %474 = sbr.rel (%p472) target = $region40
        $region39: #{tpu_custom_call.1} parent=23 // pred_region
          %s475 = sadd.s32 %s29, %s30
          %p476 = scmp.lt.s32.totalorder %s475, 0
          %s477 = scalar_select %p476, %s475, 0
          %s478 = smul.u32 2, %s477
          %p479 = scmp.lt.s32.totalorder %s28, 1
          %s480 = scalar_select %p479, %s28, 1
          %p481 = scmp.lt.s32.totalorder %s478, 1
          %s482 = scalar_select %p481, %s478, 1
          %s483 = smul.addr %s480, 2
          %s484 = sadd.s32 %s482, %s483
          %s485 = smul.addr %s484, 4
          %s486 = scalar_lea.vmem %s5, %s485
          %s487 = sadd.s32 %s29, %s30
          %p488 = scmp.lt.s32.totalorder %s487, 0
          %s489 = scalar_select %p488, %s487, 0
          %s490 = smul.u32 2, %s489
        $region40: #{tpu_custom_call.1} parent=23 // pred_fallthru
          _
        // Predicated region
        $region41: #{tpu_custom_call.1} parent=23 // pred_check
          %p491 = pneg %p246
        $region42: #{tpu_custom_call.1} parent=23 // pred_check_branch
          %493 = sbr.rel (%p491) target = $region44
        $region43: #{tpu_custom_call.1} parent=23 // pred_region
          %s494 = sadd.s32 %s29, %s30
          %p495 = scmp.lt.s32.totalorder %s494, 0
          %s496 = scalar_select %p495, %s494, 0
          %s497 = smul.u32 2, %s496
          %p498 = scmp.lt.s32.totalorder %s28, 1
          %s499 = scalar_select %p498, %s28, 1
          %p500 = scmp.lt.s32.totalorder %s497, 1
          %s501 = scalar_select %p500, %s497, 1
          %s502 = smul.addr %s499, 2
          %s503 = sadd.s32 %s501, %s502
          %s504 = smul.addr %s503, 4
          %s505 = scalar_lea.vmem %s6, %s504
          %s506 = sadd.s32 %s29, %s30
          %p507 = scmp.lt.s32.totalorder %s506, 0
          %s508 = scalar_select %p507, %s506, 0
          %s509 = smul.u32 2, %s508
        $region44: #{tpu_custom_call.1} parent=23 // pred_fallthru
          _
        // Predicated region
        $region45: #{tpu_custom_call.1} parent=23 // pred_check
          %p510 = pneg %p280
        $region46: #{tpu_custom_call.1} parent=23 // pred_check_branch
          %512 = sbr.rel (%p510) target = $region48
        $region47: #{tpu_custom_call.1} parent=23 // pred_region
          %s513 = sadd.s32 %s29, %s30
          %p514 = scmp.lt.s32.totalorder %s513, 0
          %s515 = scalar_select %p514, %s513, 0
          %s516 = smul.u32 2, %s515
          %p517 = scmp.lt.s32.totalorder %s28, 1
          %s518 = scalar_select %p517, %s28, 1
          %p519 = scmp.lt.s32.totalorder %s516, 1
          %s520 = scalar_select %p519, %s516, 1
          %s521 = smul.addr %s518, 2
          %s522 = sadd.s32 %s520, %s521
          %s523 = smul.addr %s522, 4
          %s524 = scalar_lea.vmem %s7, %s523
          %s525 = sadd.s32 %s29, %s30
          %p526 = scmp.lt.s32.totalorder %s525, 0
          %s527 = scalar_select %p526, %s525, 0
          %s528 = smul.u32 2, %s527
        $region48: #{tpu_custom_call.1} parent=23 // pred_fallthru
          _
        // Predicated region
        $region49: #{tpu_custom_call.1} parent=23 // pred_check
          %p529 = pneg %p314
        $region50: #{tpu_custom_call.1} parent=23 // pred_check_branch
          %531 = sbr.rel (%p529) target = $region52
        $region51: #{tpu_custom_call.1} parent=23 // pred_region
          %s532 = sand.u32 %s21, 1
          %s533 = scalar_lea.sflag [#allocation5], %s532
          %s534 = sand.u32 %s304, 1
          %s535 = smul.addr %s534, 64
          %s536 = scalar_lea.vmem [#allocation9], %s535
          %s537 = sadd.s32 %s29, %s30
          %p538 = scmp.lt.s32.totalorder %s537, 0
          %s539 = scalar_select %p538, %s537, 0
          %s540 = smul.u32 2, %s539
          %s542 = ssub.s32 1024, 1024
          %543 = vsyncadd %s533, %s542
          %s544 = smul.addr %s28, 8
          %s545 = sadd.s32 %s540, %s544
          %s546 = smul.addr %s545, 128
          %s547 = scalar_lea.hbm %s8, %s546
          %s548 = sshll.u32 %s536, 4
          %s549 = int_to_ptr.vmem [resolvable:$true] %s548
          %554 = dma.hbm_to_vmem [thread:$0]  %s547, 1024, %s549, %s533, 256, 256, 16
        $region52: #{tpu_custom_call.1} parent=23 // pred_fallthru
          _
        // Predicated region
        $region53: #{tpu_custom_call.1} parent=23 // pred_check
          %p555 = pneg %p340
        $region54: #{tpu_custom_call.1} parent=23 // pred_check_branch
          %557 = sbr.rel (%p555) target = $region56
        $region55: #{tpu_custom_call.1} parent=23 // pred_region
          %p558 = scmp.lt.s32.totalorder %s28, 1
          %s559 = scalar_select %p558, %s28, 1
          %s560 = smul.addr %s559, 2
          %s561 = scalar_lea.vmem %s9, %s560
        $region56: #{tpu_custom_call.1} parent=23 // pred_fallthru
          _
      $region24: #{tpu_custom_call.1} parent=5 // pred_fallthru
        _
      %p562 = scmp.le.s32.totalorder 1, %s21
      %p563 = scmp.lt.s32.totalorder %s21, 3
      %p564 = pnand %p562, %p563
      %p565 = pneg %p564
      // Predicated region
      $region57: #{tpu_custom_call.1} parent=5 // pred_check
        _
      $region58: #{tpu_custom_call.1} parent=5 // pred_check_branch
        %567 = sbr.rel (%p564) target = $region60
      $region59: #{tpu_custom_call.1} parent=5 // pred_region
        %s568 = ssub.s32 %s21, 1
        // Predicated region
        $region61: #{tpu_custom_call.1} parent=59 // pred_check
          %p569 = pneg %p61
        $region62: #{tpu_custom_call.1} parent=59 // pred_check_branch
          %571 = sbr.rel (%p569) target = $region64
        $region63: #{tpu_custom_call.1} parent=59 // pred_region
          %572 = dma.done [#allocation5], 64
        $region64: #{tpu_custom_call.1} parent=59 // pred_fallthru
          _
        // Predicated region
        $region65: #{tpu_custom_call.1} parent=59 // pred_check
          %p573 = pneg %p82
        $region66: #{tpu_custom_call.1} parent=59 // pred_check_branch
          %575 = sbr.rel (%p573) target = $region68
        $region67: #{tpu_custom_call.1} parent=59 // pred_region
          %576 = dma.done [#allocation8], 64
        $region68: #{tpu_custom_call.1} parent=59 // pred_fallthru
          _
        %s577 = sand.u32 %s26, 1
        %s578 = scalar_lea.sflag [#allocation5], %s577
        %s579 = sand.u32 %s307, 1
        %s580 = smul.addr %s579, 64
        %s581 = scalar_lea.vmem [#allocation9], %s580
        // Predicated region
        $region69: #{tpu_custom_call.1} parent=59 // pred_check
          %p582 = pneg %p320
        $region70: #{tpu_custom_call.1} parent=59 // pred_check_branch
          %584 = sbr.rel (%p582) target = $region72
        $region71: #{tpu_custom_call.1} parent=59 // pred_region
          %585 = dma.done %s578, 1024
        $region72: #{tpu_custom_call.1} parent=59 // pred_fallthru
          _
        %p586 = pneg %p61
        %p587 = pneg %p58
        %p588 = pneg %p82
        %p589 = pneg %p79
        %s590 = sadd.s32 %s32, %s33
        %p591 = scmp.lt.s32.totalorder %s590, 0
        %s592 = scalar_select %p591, %s590, 0
        %s593 = smul.u32 2, %s592
        %p594 = scmp.lt.s32.totalorder %s31, 1
        %s595 = scalar_select %p594, %s31, 1
        %p596 = scmp.lt.s32.totalorder %s593, 1
        %s597 = scalar_select %p596, %s593, 1
        %s598 = smul.addr %s595, 8
        %s599 = sadd.s32 %s597, %s598
        %s600 = smul.addr %s599, 8
        %s601 = scalar_lea.vmem %s2, %s600
        %p602 = pneg %p116
        %p603 = pneg %p113
        %s604 = sadd.s32 %s32, %s33
        %p605 = scmp.lt.s32.totalorder %s604, 0
        %s606 = scalar_select %p605, %s604, 0
        %s607 = smul.u32 2, %s606
        %p608 = scmp.lt.s32.totalorder %s31, 1
        %s609 = scalar_select %p608, %s31, 1
        %p610 = scmp.lt.s32.totalorder %s607, 1
        %s611 = scalar_select %p610, %s607, 1
        %s612 = smul.addr %s609, 2
        %s613 = sadd.s32 %s611, %s612
        %s614 = smul.addr %s613, 4
        %s615 = scalar_lea.vmem %s3, %s614
        %p616 = pneg %p150
        %p617 = pneg %p147
        %s618 = sadd.s32 %s32, %s33
        %p619 = scmp.lt.s32.totalorder %s618, 0
        %s620 = scalar_select %p619, %s618, 0
        %s621 = smul.u32 2, %s620
        %p622 = scmp.lt.s32.totalorder %s31, 1
        %s623 = scalar_select %p622, %s31, 1
        %p624 = scmp.lt.s32.totalorder %s621, 1
        %s625 = scalar_select %p624, %s621, 1
        %s626 = smul.addr %s623, 2
        %s627 = sadd.s32 %s625, %s626
        %s628 = smul.addr %s627, 4
        %s629 = scalar_lea.vmem %s4, %s628
        %p630 = pneg %p184
        %p631 = pneg %p181
        %s632 = sadd.s32 %s32, %s33
        %p633 = scmp.lt.s32.totalorder %s632, 0
        %s634 = scalar_select %p633, %s632, 0
        %s635 = smul.u32 2, %s634
        %p636 = scmp.lt.s32.totalorder %s31, 1
        %s637 = scalar_select %p636, %s31, 1
        %p638 = scmp.lt.s32.totalorder %s635, 1
        %s639 = scalar_select %p638, %s635, 1
        %s640 = smul.addr %s637, 2
        %s641 = sadd.s32 %s639, %s640
        %s642 = smul.addr %s641, 4
        %s643 = scalar_lea.vmem %s5, %s642
        %p644 = pneg %p218
        %p645 = pneg %p215
        %s646 = sadd.s32 %s32, %s33
        %p647 = scmp.lt.s32.totalorder %s646, 0
        %s648 = scalar_select %p647, %s646, 0
        %s649 = smul.u32 2, %s648
        %p650 = scmp.lt.s32.totalorder %s31, 1
        %s651 = scalar_select %p650, %s31, 1
        %p652 = scmp.lt.s32.totalorder %s649, 1
        %s653 = scalar_select %p652, %s649, 1
        %s654 = smul.addr %s651, 2
        %s655 = sadd.s32 %s653, %s654
        %s656 = smul.addr %s655, 4
        %s657 = scalar_lea.vmem %s6, %s656
        %p658 = pneg %p252
        %p659 = pneg %p249
        %s660 = sadd.s32 %s32, %s33
        %p661 = scmp.lt.s32.totalorder %s660, 0
        %s662 = scalar_select %p661, %s660, 0
        %s663 = smul.u32 2, %s662
        %p664 = scmp.lt.s32.totalorder %s31, 1
        %s665 = scalar_select %p664, %s31, 1
        %p666 = scmp.lt.s32.totalorder %s663, 1
        %s667 = scalar_select %p666, %s663, 1
        %s668 = smul.addr %s665, 2
        %s669 = sadd.s32 %s667, %s668
        %s670 = smul.addr %s669, 4
        %s671 = scalar_lea.vmem %s7, %s670
        %p672 = pneg %p286
        %p673 = pneg %p283
        %s674 = sand.u32 %s26, 1
        %s675 = scalar_lea.sflag [#allocation5], %s674
        %s676 = sand.u32 %s307, 1
        %s677 = smul.addr %s676, 64
        %s678 = scalar_lea.vmem [#allocation9], %s677
        %p679 = pneg %p320
        %p680 = pneg %p317
        %p681 = scmp.lt.s32.totalorder %s31, 1
        %s682 = scalar_select %p681, %s31, 1
        %s683 = smul.addr %s682, 2
        %s684 = scalar_lea.vmem %s9, %s683
        %p685 = pneg %p346
        %p686 = pneg %p343
        %p687 = pneg %p374
        %p688 = pneg %p371
        %s689 = sand.u32 %s361, 1
        %s690 = scalar_lea.sflag [#allocation6], %s689
        %s691 = sand.u32 %s361, 1
        %s692 = scalar_lea.vmem [#allocation10], %s691
        %s693 = sadd.s32 %s32, %s33
        %p694 = scmp.lt.s32.totalorder %s693, 0
        %s695 = scalar_select %p694, %s693, 0
        %s696 = smul.u32 2, %s695
        %p697 = scmp.lt.s32.totalorder %s31, 1
        %s698 = scalar_select %p697, %s31, 1
        %p699 = scmp.lt.s32.totalorder %s696, 1
        %s700 = scalar_select %p699, %s696, 1
        %s701 = smul.addr %s698, 8
        %s702 = sadd.s32 %s700, %s701
        %s703 = smul.addr %s702, 8
        %s704 = scalar_lea.vmem %s2, %s703
        %s705 = sadd.s32 %s32, %s33
        %p706 = scmp.lt.s32.totalorder %s705, 0
        %s707 = scalar_select %p706, %s705, 0
        %s708 = smul.u32 2, %s707
        %s709 = sadd.s32 %s32, %s33
        %p710 = scmp.lt.s32.totalorder %s709, 0
        %s711 = scalar_select %p710, %s709, 0
        %s712 = smul.u32 2, %s711
        %p713 = scmp.lt.s32.totalorder %s31, 1
        %s714 = scalar_select %p713, %s31, 1
        %p715 = scmp.lt.s32.totalorder %s712, 1
        %s716 = scalar_select %p715, %s712, 1
        %s717 = smul.addr %s714, 2
        %s718 = sadd.s32 %s716, %s717
        %s719 = smul.addr %s718, 4
        %s720 = scalar_lea.vmem %s3, %s719
        %s721 = sadd.s32 %s32, %s33
        %p722 = scmp.lt.s32.totalorder %s721, 0
        %s723 = scalar_select %p722, %s721, 0
        %s724 = smul.u32 2, %s723
        %s725 = sadd.s32 %s32, %s33
        %p726 = scmp.lt.s32.totalorder %s725, 0
        %s727 = scalar_select %p726, %s725, 0
        %s728 = smul.u32 2, %s727
        %p729 = scmp.lt.s32.totalorder %s31, 1
        %s730 = scalar_select %p729, %s31, 1
        %p731 = scmp.lt.s32.totalorder %s728, 1
        %s732 = scalar_select %p731, %s728, 1
        %s733 = smul.addr %s730, 2
        %s734 = sadd.s32 %s732, %s733
        %s735 = smul.addr %s734, 4
        %s736 = scalar_lea.vmem %s4, %s735
        %s737 = sadd.s32 %s32, %s33
        %p738 = scmp.lt.s32.totalorder %s737, 0
        %s739 = scalar_select %p738, %s737, 0
        %s740 = smul.u32 2, %s739
        %s741 = sadd.s32 %s32, %s33
        %p742 = scmp.lt.s32.totalorder %s741, 0
        %s743 = scalar_select %p742, %s741, 0
        %s744 = smul.u32 2, %s743
        %p745 = scmp.lt.s32.totalorder %s31, 1
        %s746 = scalar_select %p745, %s31, 1
        %p747 = scmp.lt.s32.totalorder %s744, 1
        %s748 = scalar_select %p747, %s744, 1
        %s749 = smul.addr %s746, 2
        %s750 = sadd.s32 %s748, %s749
        %s751 = smul.addr %s750, 4
        %s752 = scalar_lea.vmem %s5, %s751
        %s753 = sadd.s32 %s32, %s33
        %p754 = scmp.lt.s32.totalorder %s753, 0
        %s755 = scalar_select %p754, %s753, 0
        %s756 = smul.u32 2, %s755
        %s757 = sadd.s32 %s32, %s33
        %p758 = scmp.lt.s32.totalorder %s757, 0
        %s759 = scalar_select %p758, %s757, 0
        %s760 = smul.u32 2, %s759
        %p761 = scmp.lt.s32.totalorder %s31, 1
        %s762 = scalar_select %p761, %s31, 1
        %p763 = scmp.lt.s32.totalorder %s760, 1
        %s764 = scalar_select %p763, %s760, 1
        %s765 = smul.addr %s762, 2
        %s766 = sadd.s32 %s764, %s765
        %s767 = smul.addr %s766, 4
        %s768 = scalar_lea.vmem %s6, %s767
        %s769 = sadd.s32 %s32, %s33
        %p770 = scmp.lt.s32.totalorder %s769, 0
        %s771 = scalar_select %p770, %s769, 0
        %s772 = smul.u32 2, %s771
        %s773 = sadd.s32 %s32, %s33
        %p774 = scmp.lt.s32.totalorder %s773, 0
        %s775 = scalar_select %p774, %s773, 0
        %s776 = smul.u32 2, %s775
        %p777 = scmp.lt.s32.totalorder %s31, 1
        %s778 = scalar_select %p777, %s31, 1
        %p779 = scmp.lt.s32.totalorder %s776, 1
        %s780 = scalar_select %p779, %s776, 1
        %s781 = smul.addr %s778, 2
        %s782 = sadd.s32 %s780, %s781
        %s783 = smul.addr %s782, 4
        %s784 = scalar_lea.vmem %s7, %s783
        %s785 = sadd.s32 %s32, %s33
        %p786 = scmp.lt.s32.totalorder %s785, 0
        %s787 = scalar_select %p786, %s785, 0
        %s788 = smul.u32 2, %s787
        %s789 = sadd.s32 %s32, %s33
        %p790 = scmp.lt.s32.totalorder %s789, 0
        %s791 = scalar_select %p790, %s789, 0
        %s792 = smul.u32 2, %s791
        %p793 = scmp.lt.s32.totalorder %s31, 1
        %s794 = scalar_select %p793, %s31, 1
        %s795 = smul.addr %s794, 2
        %s796 = scalar_lea.vmem %s9, %s795
        %p797 = scmp.eq.s32.totalorder %s33, 0
        // Predicated region
        $region73: #{tpu_custom_call.1} parent=59 // pred_check
          %p798 = pneg %p797
        $region74: #{tpu_custom_call.1} parent=59 // pred_check_branch
          %800 = sbr.rel (%p798) target = $region76
        $region75: #{tpu_custom_call.1} parent=59 // pred_region
          %801 = vst [vmem:[#allocation2] sm:$0x77] 0.0
          %802 = vst [vmem:[#allocation3] sm:$0xff] 0.0
          %803 = vst [vmem:[#allocation3 + $0x8] sm:$0xff] 0.0
        $region76: #{tpu_custom_call.1} parent=59 // pred_fallthru
          _
        %v804 = vld [vmem:[%s704] sm:$0xff]
        %v805 = vld [vmem:[%s704 + $0x8] sm:$0xff]
        %v806 = vld [vmem:[%s704 + $0x10] sm:$0xff]
        %v807 = vld [vmem:[%s704 + $0x18] sm:$0xff]
        %v808 = vld [vmem:[%s704 + $0x20] sm:$0xff]
        %v809 = vld [vmem:[%s704 + $0x28] sm:$0xff]
        %v810 = vld [vmem:[%s704 + $0x30] sm:$0xff]
        %v811 = vld [vmem:[%s704 + $0x38] sm:$0xff]
        %v812 = vld [vmem:[#allocation7] sm:$0x7]
        %v813 = vld [vmem:[#allocation4] sm:$0x7]
        %815 = vset.pattern.permute.xlu0 0
        %816 = vperm.xlu0 %815, %v812
        %v817 = vpop.permute.xlu0 %816
        %vm819 = vcmask 261120
        %v821 = vsel %vm819, %v813, 0
        %823 = vmatprep.subr.mxu0 %v805
        %824 = vmatpush1.msra.mxu0 %v804
        %825 = vmatprep.subr.mxu0 %v807
        %826 = vmatpush1.msra.mxu0 %v806
        %827 = vmatprep.subr.mxu0 %v809
        %828 = vmatpush1.msra.mxu0 %v808
        %829 = vmatprep.subr.mxu0 %v811
        %830 = vmatpush1.msra.mxu0 %v810
        %831 = vmatprep.subr.mxu0 0.0
        %832 = vmatpush1.msra.mxu0 0.0
        %833 = vmatprep.subr.mxu0 0.0
        %834 = vmatpush1.msra.mxu0 0.0
        %835 = vmatprep.subr.mxu0 0.0
        %836 = vmatpush1.msra.mxu0 0.0
        %837 = vmatprep.subr.mxu0 0.0
        %838 = vmatpush1.msra.mxu0 0.0
        %839 = vmatprep.subr.mxu0 0.0
        %840 = vmatpush1.msra.mxu0 0.0
        %841 = vmatprep.subr.mxu0 0.0
        %842 = vmatpush1.msra.mxu0 0.0
        %843 = vmatprep.subr.mxu0 0.0
        %844 = vmatpush1.msra.mxu0 0.0
        %845 = vmatprep.subr.mxu0 0.0
        %846 = vmatpush1.msra.mxu0 0.0
        %847 = vmatprep.subr.mxu0 0.0
        %848 = vmatpush1.msra.mxu0 0.0
        %849 = vmatprep.subr.mxu0 0.0
        %850 = vmatpush1.msra.mxu0 0.0
        %851 = vmatprep.subr.mxu0 0.0
        %852 = vmatpush1.msra.mxu0 0.0
        %853 = vmatprep.subr.mxu0 0.0
        %854 = vmatpush1.msra.mxu0 0.0
        %855 = vmatprep.subr.mxu0 0.0
        %856 = vmatpush1.msra.mxu0 0.0
        %857 = vmatprep.subr.mxu0 0.0
        %858 = vmatpush1.msra.mxu0 0.0
        %859 = vmatprep.subr.mxu0 0.0
        %860 = vmatpush1.msra.mxu0 0.0
        %861 = vmatprep.subr.mxu0 0.0
        %862 = vmatpush1.msra.mxu0 0.0
        %863 = vmatprep.subr.mxu0 0.0
        %864 = vmatpush1.msra.mxu0 0.0
        %865 = vmatprep.subr.mxu0 0.0
        %866 = vmatpush1.msra.mxu0 0.0
        %867 = vmatprep.subr.mxu0 0.0
        %868 = vmatpush1.msra.mxu0 0.0
        %869 = vmatprep.subr.mxu0 0.0
        %870 = vmatpush1.msra.mxu0 0.0
        %871 = vmatprep.subr.mxu0 0.0
        %872 = vmatpush1.msra.mxu0 0.0
        %873 = vmatprep.subr.mxu0 0.0
        %874 = vmatpush1.msra.mxu0 0.0
        %875 = vmatprep.subr.mxu0 0.0
        %876 = vmatpush1.msra.mxu0 0.0
        %877 = vmatprep.subr.mxu0 0.0
        %878 = vmatpush1.msra.mxu0 0.0
        %879 = vmatprep.subr.mxu0 0.0
        %880 = vmatpush1.msra.mxu0 0.0
        %881 = vmatprep.subr.mxu0 0.0
        %882 = vmatpush1.msra.mxu0 0.0
        %883 = vmatprep.subr.mxu0 0.0
        %884 = vmatpush1.msra.mxu0 0.0
        %885 = vmatprep.subr.mxu0 0.0
        %886 = vmatpush1.msra.mxu0 0.0
        %887 = vmatprep.mubr.f32.mxu0 0.0
        %888 = vmatmul.mubr.f32.gmra.mrb[0].mxu0 %v821
        %v889 = vpop.f32.mrb[0].mxu0
        %v890 = vadd.f32 %v817, %v889
        %v891 = vpop.f32.mrb[0].mxu0
        %v892 = vadd.f32 %v817, %v891
        %893 = vdwg.mxu0
        %v894 = vld [vmem:[%s736] sm:$0x77]
        %v895 = vld [vmem:[%s752] sm:$0x77]
        %v896 = vsub.f32 %v894, %v895
        %v897 = vld [vmem:[%s720] sm:$0x77]
        %v899 = vcombine.high %v897, %v897
        %v901 = vsub.f32 %v890, %v897
        %v902 = vsub.f32 %v892, %v899
        %v903 = vld [vmem:[%s768] sm:$0x77]
        %v904 = vld [vmem:[%s784] sm:$0x77]
        %v905 = vsub.f32 %v903, %v904
        %v906 = vmul.f32 %v896, %v896
        %v907 = vmul.f32 %v906, 3.0
        %v908 = vmul.f32 %v901, %v901
        %v909 = vmul.f32 %v902, %v902
        %v912 = vcombine.low %v908, %v909
        %v914 = vadd.f32 %v907, %v912
        %v915 = vmul.f32 %v905, %v905
        %v916 = vadd.f32 %v914, %v915
        %v917 = vld [vmem:[#allocation2] sm:$0x77]
        %v918 = vadd.f32 %v917, %v916
        %919 = vst [vmem:[#allocation2] sm:$0x77] %v918
        %v920 = vld [vmem:[%s581] sm:$0xff]
        %v921 = vld [vmem:[%s581 + $0x8] sm:$0xff]
        %v922 = vld [vmem:[%s581 + $0x10] sm:$0xff]
        %v923 = vld [vmem:[%s581 + $0x18] sm:$0xff]
        %v924 = vld [vmem:[%s581 + $0x20] sm:$0xff]
        %v925 = vld [vmem:[%s581 + $0x28] sm:$0xff]
        %v926 = vld [vmem:[%s581 + $0x30] sm:$0xff]
        %v927 = vld [vmem:[%s581 + $0x38] sm:$0xff]
        %v928 = vmul.f32 %v920, %v924
        %v929 = vmul.f32 %v921, %v925
        %v930 = vmul.f32 %v922, %v926
        %v931 = vmul.f32 %v923, %v927
        %v932 = vlog2.pop %v928
        %v933 = vmul.f32 %v932, 0.6931472
        %v934 = vlog2.pop %v929
        %v935 = vmul.f32 %v934, 0.6931472
        %v936 = vlog2.pop %v930
        %v937 = vmul.f32 %v936, 0.6931472
        %v938 = vlog2.pop %v931
        %v939 = vmul.f32 %v938, 0.6931472
        %v940 = vadd.f32 %v933, %v937
        %v941 = vadd.f32 %v935, %v939
        %v942 = vld [vmem:[#allocation3] sm:$0xff]
        %v943 = vld [vmem:[#allocation3 + $0x8] sm:$0xff]
        %v944 = vadd.f32 %v942, %v940
        %v945 = vadd.f32 %v943, %v941
        %946 = vst [vmem:[#allocation3] sm:$0xff] %v944
        %947 = vst [vmem:[#allocation3 + $0x8] sm:$0xff] %v945
        // Predicated region
        $region77: #{tpu_custom_call.1} parent=59 // pred_check
          %p948 = pneg %p797
        $region78: #{tpu_custom_call.1} parent=59 // pred_check_branch
          %950 = sbr.rel (%p948) target = $region80
        $region79: #{tpu_custom_call.1} parent=59 // pred_region
          %v951 = vld [vmem:[#allocation2] sm:$0x77]
          %v953 = vcombine.high %v951, %v951
          %vm955 = vcmask 1042432
          %v956 = vsel %vm955, %v951, 0.0
          %v957 = vsel %vm955, %v953, 0.0
          %v958 = vadd.f32 %v956, %v957
          %959 = vadd.xlane.f32.xlu0 %v958
          %v960 = vpop.xlane.xlu0 %959
          %v961 = vrot.slane %v960, 4
          %v962 = vadd.f32 %v960, %v961
          %v963 = vrot.slane %v962, 2
          %v964 = vadd.f32 %v962, %v963
          %v965 = vrot.slane %v964, 1
          %v966 = vadd.f32 %v964, %v965
          %s967 = vtos %v966
          %v968 = vld [vmem:[#allocation3] sm:$0xff]
          %v969 = vld [vmem:[#allocation3 + $0x8] sm:$0xff]
          %v970 = vadd.f32 %v968, %v969
          %971 = vadd.xlane.f32.xlu0 %v970
          %v972 = vpop.xlane.xlu0 %971
          %v973 = vrot.slane %v972, 4
          %v974 = vadd.f32 %v972, %v973
          %v975 = vrot.slane %v974, 2
          %v976 = vadd.f32 %v974, %v975
          %v977 = vrot.slane %v976, 1
          %v978 = vadd.f32 %v976, %v977
          %s979 = vtos %v978
          %v980 = vld [vmem:[%s796] sm:$0x3]
          %v981 = vlog2.pop %v980
          %v982 = vmul.f32 %v981, 0.6931472
          %vm983 = vcmask 1041408
          %v984 = vsel %vm983, %v982, 0.0
          %985 = vadd.xlane.f32.xlu0 %v984
          %v986 = vpop.xlane.xlu0 %985
          %v987 = vrot.slane %v986, 4
          %v988 = vadd.f32 %v986, %v987
          %v989 = vrot.slane %v988, 2
          %v990 = vadd.f32 %v988, %v989
          %v991 = vrot.slane %v990, 1
          %v992 = vadd.f32 %v990, %v991
          %s993 = vtos %v992
          %p994 = scmp.eq.s32.totalorder %s32, 0
          %s995 = scalar_select %p994, %s993, 0.0
          %v996 = vlaneseq
          %v997 = vand.u32 %v996, 127
          %vm998 = vcmp.eq.s32.totalorder %v997, 0
          %v999 = vstv %s967
          %v1000 = vsel %vm998, %v999, 0.0
          %vm1001 = vcmp.eq.s32.totalorder %v997, 1
          %v1002 = vstv %s979
          %v1003 = vsel %vm1001, %v1002, 0.0
          %v1004 = vadd.f32 %v1000, %v1003
          %vm1005 = vcmp.eq.s32.totalorder %v997, 2
          %v1006 = vstv %s995
          %v1007 = vsel %vm1005, %v1006, 0.0
          %v1008 = vadd.f32 %v1004, %v1007
          %1009 = vst [vmem:[%s692] sm:$0x1] %v1008
        $region80: #{tpu_custom_call.1} parent=59 // pred_fallthru
          _
        %s1010 = sand.u32 %s361, 1
        %s1011 = scalar_lea.sflag [#allocation6], %s1010
        %s1012 = sand.u32 %s361, 1
        %s1013 = scalar_lea.vmem [#allocation10], %s1012
        // Predicated region
        $region81: #{tpu_custom_call.1} parent=59 // pred_check
          %p1014 = pneg %p371
        $region82: #{tpu_custom_call.1} parent=59 // pred_check_branch
          %1016 = sbr.rel (%p1014) target = $region84
        $region83: #{tpu_custom_call.1} parent=59 // pred_region
          %s1018 = ssub.s32 16, 16
          %1019 = vsyncadd %s1011, %s1018
          %s1020 = sadd.s32 %s32, %s31
          %s1021 = smul.addr %s1020, 16
          %s1022 = scalar_lea.hbm %s10, %s1021
          %s1024 = sshll.u32 %s1013, 4
          %s1025 = int_to_ptr.vmem [resolvable:$true] %s1024
          %1027 = dma.vmem_to_hbm [thread:$0]  %s1025, 16, %s1022, %s1011
        $region84: #{tpu_custom_call.1} parent=59 // pred_fallthru
          _
      $region60: #{tpu_custom_call.1} parent=5 // pred_fallthru
        _
      %p1028 = scmp.le.s32.totalorder 2, %s21
      // Predicated region
      $region85: #{tpu_custom_call.1} parent=5 // pred_check
        %p1029 = pneg %p1028
      $region86: #{tpu_custom_call.1} parent=5 // pred_check_branch
        %1031 = sbr.rel (%p1029) target = $region88
      $region87: #{tpu_custom_call.1} parent=5 // pred_region
        %s1032 = ssub.s32 %s21, 2
        // Predicated region
        $region89: #{tpu_custom_call.1} parent=87 // pred_check
          %p1033 = pneg %p377
        $region90: #{tpu_custom_call.1} parent=87 // pred_check_branch
          %1035 = sbr.rel (%p1033) target = $region92
        $region91: #{tpu_custom_call.1} parent=87 // pred_region
          %s1036 = sand.u32 %s362, 1
          %s1037 = scalar_lea.sflag [#allocation6], %s1036
          %s1038 = sand.u32 %s362, 1
          %s1039 = scalar_lea.vmem [#allocation10], %s1038
          %1040 = dma.done %s1037, 16
        $region92: #{tpu_custom_call.1} parent=87 // pred_fallthru
          _
      $region88: #{tpu_custom_call.1} parent=5 // pred_fallthru
        _
    $region6: #{tpu_custom_call.1} parent=1 // loop_footer
      %s25 = sadd.s32 1, %s21
    $region7: #{tpu_custom_call.1} parent=1 // loop_footer_branch
      %20 = sbr.rel target = $region3
    $region8: #{tpu_custom_call.1} parent=1 // loop_exit
      _
    %1041 = vsyncpa [#allocation5], 1
    %s1042 = scalar_lea.sflag [#allocation5], 1
    %1043 = vsyncpa %s1042, 1
    %1044 = vsyncpa [#allocation8], 1
    %1045 = vsyncpa [#allocation6], 1
    %s1046 = scalar_lea.sflag [#allocation6], 1
    %1047 = vsyncpa %s1046, 1

</llo_original>
